<compile_context>
chip_gen: v7x
topology: tpu7x:2x2x1
jax: 0.10.0
libtpu: 0.0.40
codegen_flags: <defaults>
</compile_context>

<pallas_src>
import jax
import jax.numpy as jnp
from jax.experimental import pallas as pl
from jax.experimental.pallas import tpu as pltpu


_BLOCK_BUDGET_BYTES = 2 * 1024 * 1024  # per-block target (f32)


def _pick_hw_tile(hw, c, itemsize=4):
    """Largest multiple-of-128 divisor of hw whose (C, t_hw) slab fits the budget."""
    if hw % 128 != 0:
        return hw  # only the full extent is a legal (non-128-multiple) block dim
    best = 128
    for t in range(128, hw + 1, 128):
        if hw % t == 0 and c * t * itemsize <= _BLOCK_BUDGET_BYTES:
            best = t
    return best


def _pick_n_tile(n, c, t_hw, itemsize=4):
    """Largest divisor of n keeping the (t_n, C, t_hw) block under the budget."""
    best = 1
    for t in range(1, n + 1):
        if n % t == 0 and t * c * t_hw * itemsize <= _BLOCK_BUDGET_BYTES:
            best = t
    return best


def _stats_kernel(x_ref, s_ref, sq_ref, acc_s_ref, acc_sq_ref):
    """Accumulate per-channel sum and sum-of-squares across all (N, HW) tiles."""
    i = pl.program_id(0)
    j = pl.program_id(1)

    @pl.when(jnp.logical_and(i == 0, j == 0))
    def _init():
        acc_s_ref[...] = jnp.zeros_like(acc_s_ref)
        acc_sq_ref[...] = jnp.zeros_like(acc_sq_ref)

    x = x_ref[...].astype(jnp.float32)              # (t_n, C, t_hw)
    acc_s_ref[...] += jnp.sum(x, axis=0)            # VPU adds over the batch tile
    acc_sq_ref[...] += jnp.sum(x * x, axis=0)       # per-lane partials, no XLU yet

    is_last = jnp.logical_and(i == pl.num_programs(0) - 1,
                              j == pl.num_programs(1) - 1)

    @pl.when(is_last)
    def _finalize():
        # single cross-lane reduce at the very end
        s_ref[...] = jnp.sum(acc_s_ref[...], axis=-1, keepdims=True)
        sq_ref[...] = jnp.sum(acc_sq_ref[...], axis=-1, keepdims=True)


def _norm_kernel(x_ref, scale_ref, shift_ref, o_ref):
    """y = x * scale_c + shift_c ; scale/shift are (C, 1), broadcast along lanes."""
    y = x_ref[...].astype(jnp.float32) * scale_ref[...] + shift_ref[...]
    o_ref[...] = y.astype(o_ref.dtype)


def meta_batch_norm_2d(x, weight, bias, *, eps=1e-5):
    """x: (N, C, H, W); weight/bias: (C,). Training-mode batch norm forward."""
    N, C, H, W = x.shape
    HW = H * W
    count = N * HW
    x3 = x.reshape(N, C, HW)  # free reshape: merges contiguous trailing dims

    t_hw = _pick_hw_tile(HW, C)
    t_n = _pick_n_tile(N, C, t_hw)
    grid = (N // t_n, HW // t_hw)   # exact divisors -> no remainder masking needed

    x_spec = pl.BlockSpec((t_n, C, t_hw), lambda i, j: (i, 0, j))
    vec_spec = pl.BlockSpec((C, 1), lambda i, j: (0, 0))

    # ---- pass 1: per-channel sum / sum-of-squares ----
    s, sq = pl.pallas_call(
        _stats_kernel,
        out_shape=(jax.ShapeDtypeStruct((C, 1), jnp.float32),
                   jax.ShapeDtypeStruct((C, 1), jnp.float32)),
        grid=grid,
        in_specs=[x_spec],
        out_specs=(vec_spec, vec_spec),
        scratch_shapes=[pltpu.VMEM((C, t_hw), jnp.float32),
                        pltpu.VMEM((C, t_hw), jnp.float32)],
        compiler_params=pltpu.CompilerParams(
            dimension_semantics=("arbitrary", "arbitrary")),
    )(x3)

    # Tiny (C,)-sized glue: per-channel scale/shift in f32.
    inv_count = 1.0 / float(count)
    mean = s * inv_count
    var = jnp.maximum(sq * inv_count - mean * mean, 0.0)   # biased variance
    inv_std = jax.lax.rsqrt(var + eps)
    scale = weight.reshape(C, 1).astype(jnp.float32) * inv_std
    shift = bias.reshape(C, 1).astype(jnp.float32) - mean * scale

    # ---- pass 2: normalize (lane-dense output blocks, both axes parallel) ----
    y3 = pl.pallas_call(
        _norm_kernel,
        out_shape=jax.ShapeDtypeStruct((N, C, HW), x.dtype),
        grid=grid,
        in_specs=[x_spec, vec_spec, vec_spec],
        out_specs=x_spec,
        compiler_params=pltpu.CompilerParams(
            dimension_semantics=("parallel", "parallel")),
    )(x3, scale, shift)

    return y3.reshape(N, C, H, W)


def _reference(x, weight, bias, eps=1e-5):
    # plain-JAX reference of training-mode batch norm (NCHW)
    m = jnp.mean(x, axis=(0, 2, 3), keepdims=True)
    v = jnp.mean((x - m) ** 2, axis=(0, 2, 3), keepdims=True)
    return (x - m) / jnp.sqrt(v + eps) * weight[None, :, None, None] + bias[None, :, None, None]


if __name__ == "__main__":
    key = jax.random.PRNGKey(0)
    kx, kw, kb = jax.random.split(key, 3)

    N, C, H, W = 2, 4, 16, 16
    x = jax.random.normal(kx, (N, C, H, W), dtype=jnp.float32)
    # Module __init__ defaults are weight=ones, bias=zeros; use non-trivial
    # deterministic values to exercise the affine path.
    weight = jax.random.normal(kw, (C,), dtype=jnp.float32) * 0.1 + 1.0
    bias = jax.random.normal(kb, (C,), dtype=jnp.float32) * 0.1

    y = meta_batch_norm_2d(x, weight, bias, eps=1e-5)
    y = jax.block_until_ready(y)

    y_ref = _reference(x, weight, bias, eps=1e-5)
    assert y.shape == (N, C, H, W)
    assert jnp.allclose(y, y_ref, atol=1e-4, rtol=1e-4), "mismatch vs reference"
    print("KERNEL_OK")
</pallas_src>

<mosaic_0001>
module attributes {stable_mosaic.version = 11 : i64} {
  func.func @_stats_kernel(%arg0: i32, %arg1: i32, %arg2: memref<2x4x256xf32, #tpu.memory_space<vmem>>, %arg3: memref<4x1xf32, #tpu.memory_space<vmem>>, %arg4: memref<4x1xf32, #tpu.memory_space<vmem>>, %arg5: memref<4x256xf32, #tpu.memory_space<vmem>>, %arg6: memref<4x256xf32, #tpu.memory_space<vmem>>) attributes {dimension_semantics = [#tpu.dimension_semantics<arbitrary>, #tpu.dimension_semantics<arbitrary>], iteration_bounds = array<i64: 1, 1>, scalar_prefetch = 0 : i64, scratch_operands = 2 : i64, tpu.core_type = #tpu.core_type<tc>, window_params = [{transform_indices = @transform_0, window_bounds = array<i64: 2, 4, 256>}, {pipeline_mode = #tpu.pipeline_mode<synchronous>, transform_indices = @transform_1, window_bounds = array<i64: 4, 1>}, {pipeline_mode = #tpu.pipeline_mode<synchronous>, transform_indices = @transform_2, window_bounds = array<i64: 4, 1>}]} {
    %c0_i32 = arith.constant 0 : i32
    %0 = arith.cmpi eq, %arg0, %c0_i32 : i32
    %c0_i32_0 = arith.constant 0 : i32
    %1 = arith.cmpi eq, %arg1, %c0_i32_0 : i32
    %2 = arith.andi %0, %1 : i1
    %3 = arith.extui %2 : i1 to i32
    %c0_i32_1 = arith.constant 0 : i32
    %4 = arith.cmpi ne, %3, %c0_i32_1 : i32
    scf.if %4 {
      %cst_16 = arith.constant 0.000000e+00 : f32
      %20 = vector.broadcast %cst_16 : f32 to vector<4x256xf32>
      %c0_17 = arith.constant 0 : index
      %c0_18 = arith.constant 0 : index
      %21 = vector.load %arg5[%c0_17, %c0_18] : memref<4x256xf32, #tpu.memory_space<vmem>>, vector<4x256xf32>
      tpu.vector_store %arg5[%c0_17, %c0_18], %20 {strides = array<i32>} : memref<4x256xf32, #tpu.memory_space<vmem>>, vector<4x256xf32>,
      %cst_19 = arith.constant 0.000000e+00 : f32
      %22 = vector.broadcast %cst_19 : f32 to vector<4x256xf32>
      %c0_20 = arith.constant 0 : index
      %c0_21 = arith.constant 0 : index
      %23 = vector.load %arg6[%c0_20, %c0_21] : memref<4x256xf32, #tpu.memory_space<vmem>>, vector<4x256xf32>
      tpu.vector_store %arg6[%c0_20, %c0_21], %22 {strides = array<i32>} : memref<4x256xf32, #tpu.memory_space<vmem>>, vector<4x256xf32>,
    } else {
    }
    %c0 = arith.constant 0 : index
    %c0_2 = arith.constant 0 : index
    %c0_3 = arith.constant 0 : index
    %5 = vector.load %arg2[%c0, %c0_2, %c0_3] : memref<2x4x256xf32, #tpu.memory_space<vmem>>, vector<2x4x256xf32>
    %c0_4 = arith.constant 0 : index
    %c0_5 = arith.constant 0 : index
    %6 = vector.load %arg5[%c0_4, %c0_5] : memref<4x256xf32, #tpu.memory_space<vmem>>, vector<4x256xf32>
    %cst = arith.constant dense<0.000000e+00> : vector<4x256xf32>
    %7 = vector.multi_reduction <add>, %5, %cst [0] : vector<2x4x256xf32> to vector<4x256xf32>
    %8 = arith.addf %6, %7 : vector<4x256xf32>
    %c0_6 = arith.constant 0 : index
    %c0_7 = arith.constant 0 : index
    %9 = vector.load %arg5[%c0_6, %c0_7] : memref<4x256xf32, #tpu.memory_space<vmem>>, vector<4x256xf32>
    tpu.vector_store %arg5[%c0_6, %c0_7], %8 {strides = array<i32>} : memref<4x256xf32, #tpu.memory_space<vmem>>, vector<4x256xf32>,
    %c0_8 = arith.constant 0 : index
    %c0_9 = arith.constant 0 : index
    %10 = vector.load %arg6[%c0_8, %c0_9] : memref<4x256xf32, #tpu.memory_space<vmem>>, vector<4x256xf32>
    %11 = arith.mulf %5, %5 : vector<2x4x256xf32>
    %cst_10 = arith.constant dense<0.000000e+00> : vector<4x256xf32>
    %12 = vector.multi_reduction <add>, %11, %cst_10 [0] : vector<2x4x256xf32> to vector<4x256xf32>
    %13 = arith.addf %10, %12 : vector<4x256xf32>
    %c0_11 = arith.constant 0 : index
    %c0_12 = arith.constant 0 : index
    %14 = vector.load %arg6[%c0_11, %c0_12] : memref<4x256xf32, #tpu.memory_space<vmem>>, vector<4x256xf32>
    tpu.vector_store %arg6[%c0_11, %c0_12], %13 {strides = array<i32>} : memref<4x256xf32, #tpu.memory_space<vmem>>, vector<4x256xf32>,
    %c0_i32_13 = arith.constant 0 : i32
    %15 = arith.cmpi eq, %arg0, %c0_i32_13 : i32
    %c0_i32_14 = arith.constant 0 : i32
    %16 = arith.cmpi eq, %arg1, %c0_i32_14 : i32
    %17 = arith.andi %15, %16 : i1
    %18 = arith.extui %17 : i1 to i32
    %c0_i32_15 = arith.constant 0 : i32
    %19 = arith.cmpi ne, %18, %c0_i32_15 : i32
    scf.if %19 {
      %c0_16 = arith.constant 0 : index
      %c0_17 = arith.constant 0 : index
      %20 = vector.load %arg5[%c0_16, %c0_17] : memref<4x256xf32, #tpu.memory_space<vmem>>, vector<4x256xf32>
      %cst_18 = arith.constant dense<0.000000e+00> : vector<4xf32>
      %21 = vector.multi_reduction <add>, %20, %cst_18 [1] : vector<4x256xf32> to vector<4xf32>
      %22 = vector.shape_cast %21 : vector<4xf32> to vector<4x1xf32>
      %c0_19 = arith.constant 0 : index
      %c0_20 = arith.constant 0 : index
      %23 = vector.load %arg3[%c0_19, %c0_20] : memref<4x1xf32, #tpu.memory_space<vmem>>, vector<4x1xf32>
      tpu.vector_store %arg3[%c0_19, %c0_20], %22 {strides = array<i32>} : memref<4x1xf32, #tpu.memory_space<vmem>>, vector<4x1xf32>,
      %c0_21 = arith.constant 0 : index
      %c0_22 = arith.constant 0 : index
      %24 = vector.load %arg6[%c0_21, %c0_22] : memref<4x256xf32, #tpu.memory_space<vmem>>, vector<4x256xf32>
      %cst_23 = arith.constant dense<0.000000e+00> : vector<4xf32>
      %25 = vector.multi_reduction <add>, %24, %cst_23 [1] : vector<4x256xf32> to vector<4xf32>
      %26 = vector.shape_cast %25 : vector<4xf32> to vector<4x1xf32>
      %c0_24 = arith.constant 0 : index
      %c0_25 = arith.constant 0 : index
      %27 = vector.load %arg4[%c0_24, %c0_25] : memref<4x1xf32, #tpu.memory_space<vmem>>, vector<4x1xf32>
      tpu.vector_store %arg4[%c0_24, %c0_25], %26 {strides = array<i32>} : memref<4x1xf32, #tpu.memory_space<vmem>>, vector<4x1xf32>,
    } else {
    }
    return
  }
  func.func @transform_0(%arg0: i32, %arg1: i32) -> (i32, i32, i32) {
    %c0_i32 = arith.constant 0 : i32
    %c0_i32_0 = arith.constant 0 : i32
    return %arg0, %c0_i32, %arg1 : i32, i32, i32
  }
  func.func @transform_1(%arg0: i32, %arg1: i32) -> (i32, i32) {
    %c0_i32 = arith.constant 0 : i32
    %c0_i32_0 = arith.constant 0 : i32
    %c0_i32_1 = arith.constant 0 : i32
    return %c0_i32, %c0_i32_0 : i32, i32
  }
  func.func @transform_2(%arg0: i32, %arg1: i32) -> (i32, i32) {
    %c0_i32 = arith.constant 0 : i32
    %c0_i32_0 = arith.constant 0 : i32
    %c0_i32_1 = arith.constant 0 : i32
    return %c0_i32, %c0_i32_0 : i32, i32
  }
}

</mosaic_0001>

<llo_original>
// kernel: tpu_custom_call.1
$region0: #{tpu_custom_call.1}
  #allocation0 [shape = 'u32[]', space=smem, size = 0x4, offset = 0x4, fixed_abs, tag = 'smem constant byte address 0x4 - core index']
  #allocation1 [shape = 'u32[144,128]{1,0:T(1,128)}', space=vmem, size = 0x12000, scoped, tag = 'internal scratch']
  #allocation2 [shape = 'f32[4,256]{1,0:T(4,128)}', space=vmem, size = 0x1000, scoped, tag = 'scratch operand']
  #allocation3 [shape = 'f32[4,256]{1,0:T(4,128)}', space=vmem, size = 0x1000, scoped, tag = 'scratch operand']
  %s0 = inlined_call_operand.hbm [shape: f32[2,4,256], index: 0, kind: input, shape index: {}]
  %s1 = inlined_call_operand.vmem [shape: f32[4,1], index: 1, kind: output, shape index: {0}]
  %s2 = inlined_call_operand.vmem [shape: f32[4,1], index: 2, kind: output, shape index: {1}]
  %3 = xla_tuple %s1, %s2
  %s4 = sld [smem:[#allocation0]]
  $region34: #{tpu_custom_call.1} parent=0
    _
  %s6 = ssub.s32 1, %s4
  %s7 = scalar_select 0, %s6, %s4
  $region1: #{tpu_custom_call.1} parent=0
    #allocation4 [shape = 'u8[8192]{0}', space=vmem, size = 0x2000, scoped, tag = 'input window, operand 0, single buffered']
    #allocation5 [shape = 's32[1]{0}', space=sflag, size = 0x4, scoped, tag = 'scoped memory for tpu_custom_call.1']
    %8 = vsyncpa [#allocation5], 0
    // Predicated region
    $region2: #{tpu_custom_call.1} parent=1 // pred_check
      _
    $region3: #{tpu_custom_call.1} parent=1 // pred_check_branch
      %10 = sbr.rel (0) target = $region5
    $region4: #{tpu_custom_call.1} parent=1 // pred_region
      %s12 = ssub.s32 256, 256
      %13 = vsyncadd [#allocation5], %s12
      %s14 = sshll.u32 [#allocation4], 4
      %s15 = int_to_ptr.vmem [resolvable:$true] %s14
      %20 = dma.hbm_to_vmem [thread:$0]  %s0, 256, %s15, [#allocation5], 128, 128, 8
    $region5: #{tpu_custom_call.1} parent=1 // pred_fallthru
      _
    // Predicated region
    $region6: #{tpu_custom_call.1} parent=1 // pred_check
      _
    $region7: #{tpu_custom_call.1} parent=1 // pred_check_branch
      %22 = sbr.rel (0) target = $region9
    $region8: #{tpu_custom_call.1} parent=1 // pred_region
      %23 = dma.done [#allocation5], 256
    $region9: #{tpu_custom_call.1} parent=1 // pred_fallthru
      _
    %p24 = scmp.eq.s32.totalorder 0, 0
    %p25 = scmp.eq.s32.totalorder 0, 0
    %p26 = pnand %p24, %p25
    %p27 = pneg %p26
    // Predicated region
    $region10: #{tpu_custom_call.1} parent=1 // pred_check
      _
    $region11: #{tpu_custom_call.1} parent=1 // pred_check_branch
      %29 = sbr.rel (%p26) target = $region13
    $region12: #{tpu_custom_call.1} parent=1 // pred_region
      %30 = vst [vmem:[#allocation2] sm:$0xff] 0.0
      %31 = vst [vmem:[#allocation3] sm:$0xff] 0.0
    $region13: #{tpu_custom_call.1} parent=1 // pred_fallthru
      _
    %v32 = vld [vmem:[#allocation4] sm:$0xff]
    %v33 = vld [vmem:[#allocation4 + $0x8] sm:$0xff]
    %v34 = vld [vmem:[#allocation2] sm:$0xff]
    %v37 = vcombine.high %v32, %v32
    %v38 = vcombine.high %v33, %v33
    %vm41 = vcmask 1043456
    %v42 = vsel %vm41, %v32, 0.0
    %v43 = vsel %vm41, %v33, 0.0
    %v44 = vadd.f32 %v42, %v43
    %v45 = vsel %vm41, %v37, 0.0
    %v46 = vsel %vm41, %v38, 0.0
    %v47 = vadd.f32 %v45, %v46
    %v50 = vcombine.low %v44, %v47
    %v52 = vadd.f32 %v34, %v50
    %53 = vst [vmem:[#allocation2] sm:$0xff] %v52
    %v54 = vld [vmem:[#allocation3] sm:$0xff]
    %v55 = vmul.f32 %v32, %v32
    %v56 = vmul.f32 %v33, %v33
    %v59 = vcombine.high %v55, %v55
    %v60 = vcombine.high %v56, %v56
    %v63 = vsel %vm41, %v55, 0.0
    %v64 = vsel %vm41, %v56, 0.0
    %v65 = vadd.f32 %v63, %v64
    %v66 = vsel %vm41, %v59, 0.0
    %v67 = vsel %vm41, %v60, 0.0
    %v68 = vadd.f32 %v66, %v67
    %v71 = vcombine.low %v65, %v68
    %v73 = vadd.f32 %v54, %v71
    %74 = vst [vmem:[#allocation3] sm:$0xff] %v73
    // Predicated region
    $region14: #{tpu_custom_call.1} parent=1 // pred_check
      _
    $region15: #{tpu_custom_call.1} parent=1 // pred_check_branch
      %76 = sbr.rel (%p26) target = $region17
    $region16: #{tpu_custom_call.1} parent=1 // pred_region
      %v77 = vld [vmem:[#allocation2] sm:$0xff]
      %v79 = vcombine.high %v77, %v77
      %v81 = vsel %vm41, %v77, 0.0
      %v82 = vsel %vm41, %v79, 0.0
      %v83 = vadd.f32 %v81, %v82
      %84 = vadd.xlane.f32.xlu0 %v83
      %v85 = vpop.xlane.xlu0 %84
      %vm86 = vcmask 3072
      %87 = vst.msk [vmem:[%s1] sm:$0xf] %vm86, %v85
      %v88 = vld [vmem:[#allocation3] sm:$0xff]
      %v90 = vcombine.high %v88, %v88
      %v92 = vsel %vm41, %v88, 0.0
      %v93 = vsel %vm41, %v90, 0.0
      %v94 = vadd.f32 %v92, %v93
      %95 = vadd.xlane.f32.xlu0 %v94
      %v96 = vpop.xlane.xlu0 %95
      %97 = vst.msk [vmem:[%s2] sm:$0xf] %vm86, %v96
    $region17: #{tpu_custom_call.1} parent=1 // pred_fallthru
      _
    // Predicated region
    $region18: #{tpu_custom_call.1} parent=1 // pred_check
      _
    $region19: #{tpu_custom_call.1} parent=1 // pred_check_branch
      %99 = sbr.rel (0) target = $region21
    $region20: #{tpu_custom_call.1} parent=1 // pred_region
      _
    $region21: #{tpu_custom_call.1} parent=1 // pred_fallthru
      _
    // Predicated region
    $region22: #{tpu_custom_call.1} parent=1 // pred_check
      _
    $region23: #{tpu_custom_call.1} parent=1 // pred_check_branch
      %101 = sbr.rel (0) target = $region25
    $region24: #{tpu_custom_call.1} parent=1 // pred_region
      _
    $region25: #{tpu_custom_call.1} parent=1 // pred_fallthru
      _
    // Predicated region
    $region26: #{tpu_custom_call.1} parent=1 // pred_check
      _
    $region27: #{tpu_custom_call.1} parent=1 // pred_check_branch
      %103 = sbr.rel (0) target = $region29
    $region28: #{tpu_custom_call.1} parent=1 // pred_region
      _
    $region29: #{tpu_custom_call.1} parent=1 // pred_fallthru
      _
    // Predicated region
    $region30: #{tpu_custom_call.1} parent=1 // pred_check
      _
    $region31: #{tpu_custom_call.1} parent=1 // pred_check_branch
      %105 = sbr.rel (0) target = $region33
    $region32: #{tpu_custom_call.1} parent=1 // pred_region
      _
    $region33: #{tpu_custom_call.1} parent=1 // pred_fallthru
      _
    %106 = vsyncpa [#allocation5], 1

</llo_original>
